<compile_context>
chip_gen: v6e
topology: v6e:2x2x1
jax: 0.10.0
libtpu: 0.0.40
codegen_flags: <defaults>
</compile_context>

<pallas_src>
import math

import jax
import jax.numpy as jnp
from jax.experimental import pallas as pl
from jax.experimental.pallas import tpu as pltpu


def _round_up(x, m):
    return (x + m - 1) // m * m


# ----------------------------------------------------------------------------
# Kernel: one tile of TQ flattened (batch*seq) query rows.
# ----------------------------------------------------------------------------
def landscape_attention_kernel(q_ref, wk_ref, bias_ref, pv_ref, out_ref):
    # q_ref    : (TQ,  Dq)   f32   query rows (feature dim un-padded)
    # wk_ref   : (Dq,  P_p)  bf16  fused (Wq/sqrt(Kd)) @ K_proto^T, lane-padded
    # bias_ref : (1,   P_p)  f32   (bq/sqrt(Kd)) @ K_proto^T, -1e9 on pad lanes
    # pv_ref   : (P_p, Vd_p) bf16  prototype values, zero padded
    # out_ref  : (TQ,  Vd_p) out_dtype
    q = q_ref[...].astype(jnp.bfloat16)  # cast in-kernel, right before the MXU

    # Scores against prototypes (projection fused into wk); f32 accumulation.
    s = jnp.dot(q, wk_ref[...], preferred_element_type=jnp.float32) + bias_ref[...]

    # Softmax over prototypes in f32 on the VPU; reciprocal goes to the EUP.
    m = jnp.max(s, axis=-1, keepdims=True)
    e = jnp.exp(s - m)
    p = e * pl.reciprocal(jnp.sum(e, axis=-1, keepdims=True), approx=True)

    # Landscape context.
    ctx = jnp.dot(p.astype(jnp.bfloat16), pv_ref[...],
                  preferred_element_type=jnp.float32)
    out_ref[...] = ctx.astype(out_ref.dtype)


# ----------------------------------------------------------------------------
# One-time constant preparation (loop-invariant across calls).
# ----------------------------------------------------------------------------
def prepare_landscape_params(w, b, proto_keys, proto_values):
    """Fold 1/sqrt(Kd), fuse Wq into the prototype keys, pad and cast.

    Call once (module init / cached) and pass the result through `params=` so
    the per-call path only touches the query.
    """
    Dq, Kd = w.shape
    P = proto_keys.shape[0]
    Vd = proto_values.shape[1]
    scale = 1.0 / math.sqrt(Kd)

    P_p = _round_up(P, 128)
    Vd_p = _round_up(Vd, 128)

    # Exact fusion:  (q @ W + b) @ K^T * s  ==  q @ (W @ K^T * s) + (b @ K^T * s)
    wk = (w.astype(jnp.float32) @ proto_keys.T.astype(jnp.float32)) * scale  # (Dq, P)
    bk = (b.astype(jnp.float32) @ proto_keys.T.astype(jnp.float32)) * scale  # (P,)

    wk_p = jnp.pad(wk, ((0, 0), (0, P_p - P))).astype(jnp.bfloat16)
    bias = jnp.pad(bk, (0, P_p - P)) + jnp.where(jnp.arange(P_p) < P, 0.0, -1e9)
    bias = bias.reshape(1, P_p).astype(jnp.float32)
    pv_p = jnp.pad(proto_values,
                   ((0, P_p - P), (0, Vd_p - Vd))).astype(jnp.bfloat16)
    return {"wk": wk_p, "bias": bias, "pv": pv_p, "P": P, "Vd": Vd}


def _choose_tq(M):
    # Large tiles amortize the ~0.35us/step overhead; multiples of 256 keep the
    # 2x256x256 MXU (v6e/v7x) full (128 suffices on v5e).  Keep >= 2 grid steps
    # when M allows so the "parallel" axis can shard across v7x's two TCs.
    if M <= 512:
        return max(16, _round_up(M, 16))
    tq = 1024 if M >= 4096 else 512
    while tq > 256 and _round_up(M, tq) // tq < 2:
        tq //= 2
    return tq


# ----------------------------------------------------------------------------
# Wrapper: tiling + pallas_call.
# ----------------------------------------------------------------------------
def landscape_attention(query, w, b, proto_keys, proto_values, *,
                        tq=None, out_dtype=jnp.float32, params=None):
    """Forward pass of LandscapeAttention.

    query        : (B, S, Dq) f32
    w            : (Dq, Kd)   query_proj weight stored pre-transposed (in, out)
    b            : (Kd,)      query_proj bias
    proto_keys   : (P, Kd)
    proto_values : (P, Vd)
    returns      : (B, S, Vd) in `out_dtype`
    """
    B, S, Dq = query.shape
    if params is None:
        params = prepare_landscape_params(w, b, proto_keys, proto_values)
    wk, bias, pv = params["wk"], params["bias"], params["pv"]
    P_p = wk.shape[1]
    Vd_p = pv.shape[1]
    Vd = params["Vd"]

    # Flatten (B, S) into one row axis (attention is independent per position).
    M = B * S
    TQ = _choose_tq(M) if tq is None else max(16, _round_up(tq, 16))
    M_p = _round_up(M, TQ)

    q2 = query.reshape(M, Dq)
    if M_p != M:  # only row padding; no feature-dim pad and no wrapper cast
        q2 = jnp.pad(q2, ((0, M_p - M), (0, 0)))

    # Scoped-VMEM budget: double-buffered q/out tiles + constants (default
    # double-buffered) + f32 softmax intermediates, clamped to 64 MiB so it is
    # valid on every generation (v7x physical VMEM is 64 MiB).
    out_itemsize = jnp.dtype(out_dtype).itemsize
    const_bytes = wk.size * 2 + bias.size * 4 + pv.size * 2
    tile_bytes = TQ * Dq * 4 + TQ * Vd_p * out_itemsize
    vmem_limit = int(min(64 << 20,
                         max(32 << 20,
                             2 * (const_bytes + tile_bytes) + 4 * TQ * P_p * 4)))

    out = pl.pallas_call(
        landscape_attention_kernel,
        out_shape=jax.ShapeDtypeStruct((M_p, Vd_p), out_dtype),
        grid_spec=pltpu.PrefetchScalarGridSpec(
            num_scalar_prefetch=0,
            grid=(M_p // TQ,),
            in_specs=[
                pl.BlockSpec((TQ, Dq), lambda i: (i, 0)),     # query rows (tiled)
                # Constants: block index never changes -> fetched once.
                # TODO(synk): for very large prototype tables, single-buffer
                # these (pl.Buffered(1) / one-time DMA to scratch) and tile P
                # as a second "arbitrary" grid axis with an online softmax to
                # respect v7x's 64 MiB VMEM; optionally store them in fp8 there.
                pl.BlockSpec((Dq, P_p), lambda i: (0, 0)),    # fused Wq @ K^T
                pl.BlockSpec((1, P_p), lambda i: (0, 0)),     # fused bias + lane mask
                pl.BlockSpec((P_p, Vd_p), lambda i: (0, 0)),  # prototype values
            ],
            out_specs=pl.BlockSpec((TQ, Vd_p), lambda i: (i, 0))),
        compiler_params=pltpu.CompilerParams(
            dimension_semantics=("parallel",),
            vmem_limit_bytes=vmem_limit),
    )(q2, wk, bias, pv)

    return out[:M, :Vd].reshape(B, S, Vd)


# ----------------------------------------------------------------------------
# Pure-JAX f32 reference (mirrors the PyTorch forward).
# ----------------------------------------------------------------------------
def landscape_attention_ref(query, w, b, proto_keys, proto_values):
    qp = query @ w + b
    s = qp @ proto_keys.T / math.sqrt(proto_keys.shape[1])
    a = jax.nn.softmax(s, axis=-1)
    return a @ proto_values


# ----------------------------------------------------------------------------
if __name__ == "__main__":
    key = jax.random.PRNGKey(0)
    B, S = 2, 8
    query_dim, num_prototypes = 32, 8
    prototype_key_dim, prototype_value_dim = 16, 16

    k_w, k_pk, k_pv, k_q, k_q2 = jax.random.split(key, 5)

    def xavier_uniform(k, shape):
        bound = math.sqrt(6.0 / (shape[0] + shape[1]))
        return jax.random.uniform(k, shape, jnp.float32, -bound, bound)

    # nn.Linear weight stored pre-transposed as (in, out); bias zero-init
    # (matches the module's xavier_uniform_ / zeros_ init).
    w = xavier_uniform(k_w, (query_dim, prototype_key_dim))
    b = jnp.zeros((prototype_key_dim,), jnp.float32)
    proto_keys = xavier_uniform(k_pk, (num_prototypes, prototype_key_dim))
    proto_values = xavier_uniform(k_pv, (num_prototypes, prototype_value_dim))
    query = jax.random.normal(k_q, (B, S, query_dim), jnp.float32)

    # Constants fused / padded once, off the per-call path.
    params = prepare_landscape_params(w, b, proto_keys, proto_values)

    out = landscape_attention(query, w, b, proto_keys, proto_values,
                              params=params)
    jax.block_until_ready(out)
    ref = landscape_attention_ref(query, w, b, proto_keys, proto_values)

    assert out.shape == (B, S, prototype_value_dim)
    assert bool(jnp.all(jnp.isfinite(out)))
    err = float(jnp.max(jnp.abs(out - ref)))
    assert err < 5e-2, f"max abs err vs f32 reference: {err}"

    # Explicit small tile (rounded to the >=16 bf16 sublane minimum).
    out2 = landscape_attention(query, w, b, proto_keys, proto_values,
                               params=params, tq=16)
    jax.block_until_ready(out2)
    err2 = float(jnp.max(jnp.abs(out2 - ref)))
    assert err2 < 5e-2, f"max abs err (tq=16) vs f32 reference: {err2}"

    # Multi-step pipelined grid with row padding (M=120 -> M_p=128, grid=4).
    query3 = jax.random.normal(k_q2, (3, 40, query_dim), jnp.float32)
    out3 = landscape_attention(query3, w, b, proto_keys, proto_values,
                               params=params, tq=32)
    jax.block_until_ready(out3)
    ref3 = landscape_attention_ref(query3, w, b, proto_keys, proto_values)
    err3 = float(jnp.max(jnp.abs(out3 - ref3)))
    assert err3 < 5e-2, f"max abs err (grid>1) vs f32 reference: {err3}"

    print("KERNEL_OK")
</pallas_src>

<mosaic_0001>
module attributes {stable_mosaic.version = 11 : i64} {
  func.func @landscape_attention_kernel(%arg0: i32, %arg1: memref<16x32xf32, #tpu.memory_space<vmem>>, %arg2: memref<32x128xbf16, #tpu.memory_space<vmem>>, %arg3: memref<1x128xf32, #tpu.memory_space<vmem>>, %arg4: memref<128x128xbf16, #tpu.memory_space<vmem>>, %arg5: memref<16x128xf32, #tpu.memory_space<vmem>>) attributes {dimension_semantics = [#tpu.dimension_semantics<parallel>], iteration_bounds = array<i64: 1>, scalar_prefetch = 0 : i64, scratch_operands = 0 : i64, tpu.core_type = #tpu.core_type<tc>, window_params = [{transform_indices = @transform_0, window_bounds = array<i64: 16, 32>}, {pipeline_mode = #tpu.pipeline_mode<synchronous>, transform_indices = @transform_1, window_bounds = array<i64: 32, 128>}, {pipeline_mode = #tpu.pipeline_mode<synchronous>, transform_indices = @transform_2, window_bounds = array<i64: 1, 128>}, {pipeline_mode = #tpu.pipeline_mode<synchronous>, transform_indices = @transform_3, window_bounds = array<i64: 128, 128>}, {transform_indices = @transform_4, window_bounds = array<i64: 16, 128>}]} {
    %c0 = arith.constant 0 : index
    %c0_0 = arith.constant 0 : index
    %0 = vector.load %arg1[%c0, %c0_0] : memref<16x32xf32, #tpu.memory_space<vmem>>, vector<16x32xf32>
    %1 = arith.truncf %0 : vector<16x32xf32> to vector<16x32xbf16>
    %c0_1 = arith.constant 0 : index
    %c0_2 = arith.constant 0 : index
    %2 = vector.load %arg2[%c0_1, %c0_2] : memref<32x128xbf16, #tpu.memory_space<vmem>>, vector<32x128xbf16>
    %cst = arith.constant dense<0.000000e+00> : vector<16x128xf32>
    %3 = tpu.matmul %1, %2, %cst {dimension_numbers = #tpu.dot_dimension_numbers<[1], [0], [0], [1], [0, 0, 1, 1], [], []>} : vector<16x32xbf16>, vector<32x128xbf16>, vector<16x128xf32> -> vector<16x128xf32>
    %c0_3 = arith.constant 0 : index
    %c0_4 = arith.constant 0 : index
    %4 = vector.load %arg3[%c0_3, %c0_4] : memref<1x128xf32, #tpu.memory_space<vmem>>, vector<1x128xf32>
    %5 = vector.broadcast %4 : vector<1x128xf32> to vector<16x128xf32>
    %6 = arith.addf %3, %5 : vector<16x128xf32>
    %cst_5 = arith.constant dense<0xFF800000> : vector<16xf32>
    %7 = vector.multi_reduction <maximumf>, %6, %cst_5 [1] : vector<16x128xf32> to vector<16xf32>
    %8 = vector.shape_cast %7 : vector<16xf32> to vector<16x1xf32>
    %9 = vector.broadcast %8 : vector<16x1xf32> to vector<16x128xf32>
    %10 = arith.subf %6, %9 : vector<16x128xf32>
    %11 = math.exp %10 : vector<16x128xf32>
    %cst_6 = arith.constant dense<0.000000e+00> : vector<16xf32>
    %12 = vector.multi_reduction <add>, %11, %cst_6 [1] : vector<16x128xf32> to vector<16xf32>
    %13 = vector.shape_cast %12 : vector<16xf32> to vector<16x1xf32>
    %14 = tpu.reciprocal %13 {approx = true} : vector<16x1xf32> -> vector<16x1xf32>
    %15 = vector.broadcast %14 : vector<16x1xf32> to vector<16x128xf32>
    %16 = arith.mulf %11, %15 : vector<16x128xf32>
    %17 = arith.truncf %16 : vector<16x128xf32> to vector<16x128xbf16>
    %c0_7 = arith.constant 0 : index
    %c0_8 = arith.constant 0 : index
    %18 = vector.load %arg4[%c0_7, %c0_8] : memref<128x128xbf16, #tpu.memory_space<vmem>>, vector<128x128xbf16>
    %cst_9 = arith.constant dense<0.000000e+00> : vector<16x128xf32>
    %19 = tpu.matmul %17, %18, %cst_9 {dimension_numbers = #tpu.dot_dimension_numbers<[1], [0], [0], [1], [0, 0, 1, 1], [], []>} : vector<16x128xbf16>, vector<128x128xbf16>, vector<16x128xf32> -> vector<16x128xf32>
    %c0_10 = arith.constant 0 : index
    %c0_11 = arith.constant 0 : index
    %20 = vector.load %arg5[%c0_10, %c0_11] : memref<16x128xf32, #tpu.memory_space<vmem>>, vector<16x128xf32>
    tpu.vector_store %arg5[%c0_10, %c0_11], %19 {strides = array<i32>} : memref<16x128xf32, #tpu.memory_space<vmem>>, vector<16x128xf32>,
    return
  }
  func.func @transform_0(%arg0: i32) -> (i32, i32) {
    %c0_i32 = arith.constant 0 : i32
    %c0_i32_0 = arith.constant 0 : i32
    return %arg0, %c0_i32 : i32, i32
  }
  func.func @transform_1(%arg0: i32) -> (i32, i32) {
    %c0_i32 = arith.constant 0 : i32
    %c0_i32_0 = arith.constant 0 : i32
    %c0_i32_1 = arith.constant 0 : i32
    return %c0_i32, %c0_i32_0 : i32, i32
  }
  func.func @transform_2(%arg0: i32) -> (i32, i32) {
    %c0_i32 = arith.constant 0 : i32
    %c0_i32_0 = arith.constant 0 : i32
    %c0_i32_1 = arith.constant 0 : i32
    return %c0_i32, %c0_i32_0 : i32, i32
  }
  func.func @transform_3(%arg0: i32) -> (i32, i32) {
    %c0_i32 = arith.constant 0 : i32
    %c0_i32_0 = arith.constant 0 : i32
    %c0_i32_1 = arith.constant 0 : i32
    return %c0_i32, %c0_i32_0 : i32, i32
  }
  func.func @transform_4(%arg0: i32) -> (i32, i32) {
    %c0_i32 = arith.constant 0 : i32
    %c0_i32_0 = arith.constant 0 : i32
    return %arg0, %c0_i32 : i32, i32
  }
}

</mosaic_0001>

<llo_original>
// kernel: tpu_custom_call.1
$region0: #{tpu_custom_call.1}
  #allocation0 [shape = 'u32[]', space=smem, size = 0x4, offset = 0x4, fixed_abs, tag = 'smem constant byte address 0x4 - core index']
  #allocation1 [shape = 'u32[144,128]{1,0:T(1,128)}', space=vmem, size = 0x12000, scoped, tag = 'internal scratch']
  %s0 = inlined_call_operand.hbm [shape: f32[16,32], index: 0, kind: input, shape index: {}]
  %s1 = inlined_call_operand.hbm [shape: bf16[32,128], index: 1, kind: input, shape index: {}]
  %s2 = inlined_call_operand.vmem [shape: f32[1,128], index: 2, kind: input, shape index: {}]
  %s3 = inlined_call_operand.hbm [shape: bf16[128,128], index: 3, kind: input, shape index: {}]
  %s4 = inlined_call_operand.hbm [shape: f32[16,128], index: 4, kind: output, shape index: {}]
  %s5 = sld [smem:[#allocation0]]
  $region38: #{tpu_custom_call.1} parent=0
    _
  %s7 = ssub.s32 1, %s5
  %s8 = scalar_select 0, %s7, %s5
  $region1: #{tpu_custom_call.1} parent=0
    #allocation2 [shape = 'u8[8192]{0}', space=vmem, size = 0x2000, scoped, tag = 'input window, operand 0, single buffered']
    #allocation3 [shape = 's32[1]{0}', space=sflag, size = 0x4, scoped, tag = 'scoped memory for tpu_custom_call.1']
    #allocation4 [shape = 's32[1]{0}', space=sflag, size = 0x4, scoped, tag = 'scoped memory for tpu_custom_call.1']
    #allocation5 [shape = 'u8[8192]{0}', space=vmem, size = 0x2000, scoped, tag = 'input window, operand 1, single buffered']
    #allocation6 [shape = 's32[1]{0}', space=sflag, size = 0x4, scoped, tag = 'scoped memory for tpu_custom_call.1']
    #allocation7 [shape = 'u8[32768]{0}', space=vmem, size = 0x8000, scoped, tag = 'input window, operand 3, single buffered']
    #allocation8 [shape = 'u8[8192]{0}', space=vmem, size = 0x2000, scoped, tag = 'output window, operand 0, single buffered']
    %9 = vsyncpa [#allocation3], 0
    %10 = vsyncpa [#allocation6], 0
    %11 = vsyncpa [#allocation4], 0
    // Predicated region
    $region2: #{tpu_custom_call.1} parent=1 // pred_check
      _
    $region3: #{tpu_custom_call.1} parent=1 // pred_check_branch
      %13 = sbr.rel (0) target = $region5
    $region4: #{tpu_custom_call.1} parent=1 // pred_region
      %s15 = ssub.s32 256, 256
      %16 = vsyncadd [#allocation3], %s15
      %s17 = sshll.u32 [#allocation2], 4
      %s18 = int_to_ptr.vmem [resolvable:$true] %s17
      %23 = dma.hbm_to_vmem [thread:$0]  %s0, 256, %s18, [#allocation3], 128, 128, 8
    $region5: #{tpu_custom_call.1} parent=1 // pred_fallthru
      _
    // Predicated region
    $region6: #{tpu_custom_call.1} parent=1 // pred_check
      _
    $region7: #{tpu_custom_call.1} parent=1 // pred_check_branch
      %25 = sbr.rel (0) target = $region9
    $region8: #{tpu_custom_call.1} parent=1 // pred_region
      %s27 = ssub.s32 256, 256
      %28 = vsyncadd [#allocation6], %s27
      %s29 = sshll.u32 [#allocation5], 4
      %s30 = int_to_ptr.vmem [resolvable:$true] %s29
      %35 = dma.hbm_to_vmem [thread:$0]  %s1, 256, %s30, [#allocation6], 64, 64, 4
    $region9: #{tpu_custom_call.1} parent=1 // pred_fallthru
      _
    // Predicated region
    $region10: #{tpu_custom_call.1} parent=1 // pred_check
      _
    $region11: #{tpu_custom_call.1} parent=1 // pred_check_branch
      %37 = sbr.rel (0) target = $region13
    $region12: #{tpu_custom_call.1} parent=1 // pred_region
      _
    $region13: #{tpu_custom_call.1} parent=1 // pred_fallthru
      _
    // Predicated region
    $region14: #{tpu_custom_call.1} parent=1 // pred_check
      _
    $region15: #{tpu_custom_call.1} parent=1 // pred_check_branch
      %39 = sbr.rel (0) target = $region17
    $region16: #{tpu_custom_call.1} parent=1 // pred_region
      %s41 = ssub.s32 1024, 1024
      %42 = vsyncadd [#allocation6], %s41
      %s43 = sshll.u32 [#allocation7], 4
      %s44 = int_to_ptr.vmem [resolvable:$true] %s43
      %49 = dma.hbm_to_vmem [thread:$0]  %s3, 1024, %s44, [#allocation6], 64, 64, 4
    $region17: #{tpu_custom_call.1} parent=1 // pred_fallthru
      _
    // Predicated region
    $region18: #{tpu_custom_call.1} parent=1 // pred_check
      _
    $region19: #{tpu_custom_call.1} parent=1 // pred_check_branch
      %51 = sbr.rel (0) target = $region21
    $region20: #{tpu_custom_call.1} parent=1 // pred_region
      %52 = dma.done [#allocation3], 256
    $region21: #{tpu_custom_call.1} parent=1 // pred_fallthru
      _
    // Predicated region
    $region22: #{tpu_custom_call.1} parent=1 // pred_check
      _
    $region23: #{tpu_custom_call.1} parent=1 // pred_check_branch
      %54 = sbr.rel (0) target = $region25
    $region24: #{tpu_custom_call.1} parent=1 // pred_region
      %55 = dma.done [#allocation6], 256
    $region25: #{tpu_custom_call.1} parent=1 // pred_fallthru
      _
    // Predicated region
    $region26: #{tpu_custom_call.1} parent=1 // pred_check
      _
    $region27: #{tpu_custom_call.1} parent=1 // pred_check_branch
      %57 = sbr.rel (0) target = $region29
    $region28: #{tpu_custom_call.1} parent=1 // pred_region
      %58 = dma.done [#allocation6], 1024
    $region29: #{tpu_custom_call.1} parent=1 // pred_fallthru
      _
    %v60 = vld [vmem:[#allocation2] sm:$0xff]
    %v61 = vld [vmem:[#allocation2 + $0x8] sm:$0xff]
    %v62 = vpack.c.bf16 %v61, %v60
    %v63 = vld [vmem:[#allocation5] sm:$0xf]
    %v64 = vld [vmem:[#allocation5 + $0x4] sm:$0xf]
    %v65 = vld [vmem:[#allocation5 + $0x8] sm:$0xf]
    %v66 = vld [vmem:[#allocation5 + $0xc] sm:$0xf]
    %v67 = vld [vmem:[%s2] sm:$0x1]
    %v69 = vlaneseq
    %v70 = vshrl.u32 %v69, 7
    %v71 = vsub.s32 0, %v70
    %v72 = vrot.slane %v67, %v71
    %v78 = vunpack.c.l.b16 %v63
    %v79 = vunpack.c.l.b16 %v64
    %v80 = vunpack.c.l.b16 %v65
    %v81 = vunpack.c.l.b16 %v66
    %v82 = vpack.c.b16 %v79, %v78
    %v83 = vpack.c.b16 %v81, %v80
    %vm86 = vcmask 261120
    %v88 = vsel %vm86, %v62, 0
    %90 = vmatprep.subr.bf16.mxu0 0
    %91 = vmatpush1.bf16.msra.mxu0 0
    %92 = vmatprep.subr.bf16.mxu0 0
    %93 = vmatpush1.bf16.msra.mxu0 0
    %94 = vmatprep.subr.bf16.mxu0 0
    %95 = vmatpush1.bf16.msra.mxu0 0
    %96 = vmatprep.subr.bf16.mxu0 0
    %97 = vmatpush1.bf16.msra.mxu0 0
    %98 = vmatprep.subr.bf16.mxu0 0
    %99 = vmatpush1.bf16.msra.mxu0 0
    %100 = vmatprep.subr.bf16.mxu0 0
    %101 = vmatpush1.bf16.msra.mxu0 0
    %102 = vmatprep.subr.bf16.mxu0 0
    %103 = vmatpush1.bf16.msra.mxu0 %v83
    %104 = vmatprep.subr.bf16.mxu0 0
    %105 = vmatpush1.bf16.msra.mxu0 %v82
    %106 = vmatprep.subr.bf16.mxu0 0
    %107 = vmatpush2.bf16.msra.mxu0 0
    %108 = vmatprep.subr.bf16.mxu0 0
    %109 = vmatpush2.bf16.msra.mxu0 0
    %110 = vmatprep.subr.bf16.mxu0 0
    %111 = vmatpush2.bf16.msra.mxu0 0
    %112 = vmatprep.subr.bf16.mxu0 0
    %113 = vmatpush2.bf16.msra.mxu0 0
    %114 = vmatprep.subr.bf16.mxu0 0
    %115 = vmatpush2.bf16.msra.mxu0 0
    %116 = vmatprep.subr.bf16.mxu0 0
    %117 = vmatpush2.bf16.msra.mxu0 0
    %118 = vmatprep.subr.bf16.mxu0 0
    %119 = vmatpush2.bf16.msra.mxu0 0
    %120 = vmatprep.subr.bf16.mxu0 0
    %121 = vmatpush2.bf16.msra.mxu0 0
    %122 = vmatprep.mubr.bf16.mxu0 0
    %123 = vmatmul.mubr.bf16.gmra.mxu0 %v88
    %v124 = vpop.f32.mrf.mxu0
    %v125 = vadd.f32 %v72, %v124
    %v126 = vpop.f32.mrf.mxu0
    %v127 = vpop.f32.mrf.mxu0
    %v128 = vadd.f32 %v72, %v127
    %v129 = vpop.f32.mrf.mxu0
    %130 = vdwg.mxu0
    %131 = vmax.xlane.f32.xlu0 %v125
    %v132 = vpop.xlane.xlu0 %131
    %133 = vmax.xlane.f32.xlu0 %v128
    %v134 = vpop.xlane.xlu0 %133
    %v135 = vsub.f32 %v125, %v132
    %v136 = vsub.f32 %v128, %v134
    %v137 = vmul.f32 %v135, 1.442695
    %v138 = vpow.pop %v137
    %v139 = vmul.f32 %v136, 1.442695
    %v140 = vpow.pop %v139
    %141 = vadd.xlane.f32.xlu0 %v138
    %v142 = vpop.xlane.xlu0 %141
    %143 = vadd.xlane.f32.xlu0 %v140
    %v144 = vpop.xlane.xlu0 %143
    %v145 = vrcp.pop %v142
    %v146 = vrcp.pop %v144
    %v147 = vmul.f32 %v138, %v145
    %v148 = vmul.f32 %v140, %v146
    %v149 = vpack.c.bf16 %v148, %v147
    %v150 = vld [vmem:[#allocation7] sm:$0xf]
    %v151 = vld [vmem:[#allocation7 + $0x4] sm:$0xf]
    %v152 = vld [vmem:[#allocation7 + $0x8] sm:$0xf]
    %v153 = vld [vmem:[#allocation7 + $0xc] sm:$0xf]
    %v154 = vld [vmem:[#allocation7 + $0x10] sm:$0xf]
    %v155 = vld [vmem:[#allocation7 + $0x14] sm:$0xf]
    %v156 = vld [vmem:[#allocation7 + $0x18] sm:$0xf]
    %v157 = vld [vmem:[#allocation7 + $0x1c] sm:$0xf]
    %v158 = vld [vmem:[#allocation7 + $0x20] sm:$0xf]
    %v159 = vld [vmem:[#allocation7 + $0x24] sm:$0xf]
    %v160 = vld [vmem:[#allocation7 + $0x28] sm:$0xf]
    %v161 = vld [vmem:[#allocation7 + $0x2c] sm:$0xf]
    %v162 = vld [vmem:[#allocation7 + $0x30] sm:$0xf]
    %v163 = vld [vmem:[#allocation7 + $0x34] sm:$0xf]
    %v164 = vld [vmem:[#allocation7 + $0x38] sm:$0xf]
    %v165 = vld [vmem:[#allocation7 + $0x3c] sm:$0xf]
    %v182 = vunpack.c.l.b16 %v150
    %v183 = vunpack.c.l.b16 %v151
    %v184 = vunpack.c.l.b16 %v152
    %v185 = vunpack.c.l.b16 %v153
    %v186 = vunpack.c.l.b16 %v154
    %v187 = vunpack.c.l.b16 %v155
    %v188 = vunpack.c.l.b16 %v156
    %v189 = vunpack.c.l.b16 %v157
    %v190 = vunpack.c.l.b16 %v158
    %v191 = vunpack.c.l.b16 %v159
    %v192 = vunpack.c.l.b16 %v160
    %v193 = vunpack.c.l.b16 %v161
    %v194 = vunpack.c.l.b16 %v162
    %v195 = vunpack.c.l.b16 %v163
    %v196 = vunpack.c.l.b16 %v164
    %v197 = vunpack.c.l.b16 %v165
    %v198 = vpack.c.b16 %v183, %v182
    %v199 = vpack.c.b16 %v185, %v184
    %v200 = vpack.c.b16 %v187, %v186
    %v201 = vpack.c.b16 %v189, %v188
    %v202 = vpack.c.b16 %v191, %v190
    %v203 = vpack.c.b16 %v193, %v192
    %v204 = vpack.c.b16 %v195, %v194
    %v205 = vpack.c.b16 %v197, %v196
    %214 = vmatprep.subr.bf16.mxu0 0
    %215 = vmatpush1.bf16.msra.mxu0 %v205
    %216 = vmatprep.subr.bf16.mxu0 0
    %217 = vmatpush1.bf16.msra.mxu0 %v204
    %218 = vmatprep.subr.bf16.mxu0 0
    %219 = vmatpush1.bf16.msra.mxu0 %v203
    %220 = vmatprep.subr.bf16.mxu0 0
    %221 = vmatpush1.bf16.msra.mxu0 %v202
    %222 = vmatprep.subr.bf16.mxu0 0
    %223 = vmatpush1.bf16.msra.mxu0 %v201
    %224 = vmatprep.subr.bf16.mxu0 0
    %225 = vmatpush1.bf16.msra.mxu0 %v200
    %226 = vmatprep.subr.bf16.mxu0 0
    %227 = vmatpush1.bf16.msra.mxu0 %v199
    %228 = vmatprep.subr.bf16.mxu0 0
    %229 = vmatpush1.bf16.msra.mxu0 %v198
    %230 = vmatprep.subr.bf16.mxu0 0
    %231 = vmatpush2.bf16.msra.mxu0 0
    %232 = vmatprep.subr.bf16.mxu0 0
    %233 = vmatpush2.bf16.msra.mxu0 0
    %234 = vmatprep.subr.bf16.mxu0 0
    %235 = vmatpush2.bf16.msra.mxu0 0
    %236 = vmatprep.subr.bf16.mxu0 0
    %237 = vmatpush2.bf16.msra.mxu0 0
    %238 = vmatprep.subr.bf16.mxu0 0
    %239 = vmatpush2.bf16.msra.mxu0 0
    %240 = vmatprep.subr.bf16.mxu0 0
    %241 = vmatpush2.bf16.msra.mxu0 0
    %242 = vmatprep.subr.bf16.mxu0 0
    %243 = vmatpush2.bf16.msra.mxu0 0
    %244 = vmatprep.subr.bf16.mxu0 0
    %245 = vmatpush2.bf16.msra.mxu0 0
    %246 = vmatprep.mubr.bf16.mxu0 0
    %247 = vmatmul.mubr.bf16.gmra.mxu0 %v149
    %v248 = vpop.f32.mrf.mxu0
    %v249 = vadd.f32 0.0, %v248
    %v250 = vpop.f32.mrf.mxu0
    %v251 = vpop.f32.mrf.mxu0
    %v252 = vadd.f32 0.0, %v251
    %v253 = vpop.f32.mrf.mxu0
    %254 = vdwg.mxu0
    %255 = vst [vmem:[#allocation8] sm:$0xff] %v249
    %256 = vst [vmem:[#allocation8 + $0x8] sm:$0xff] %v252
    // Predicated region
    $region30: #{tpu_custom_call.1} parent=1 // pred_check
      _
    $region31: #{tpu_custom_call.1} parent=1 // pred_check_branch
      %258 = sbr.rel (0) target = $region33
    $region32: #{tpu_custom_call.1} parent=1 // pred_region
      %s260 = ssub.s32 256, 256
      %261 = vsyncadd [#allocation4], %s260
      %s262 = sshll.u32 [#allocation8], 4
      %s263 = int_to_ptr.vmem [resolvable:$true] %s262
      %268 = dma.vmem_to_hbm [thread:$0]  %s263, 256, %s4, [#allocation4], 128, 128, 8
    $region33: #{tpu_custom_call.1} parent=1 // pred_fallthru
      _
    // Predicated region
    $region34: #{tpu_custom_call.1} parent=1 // pred_check
      _
    $region35: #{tpu_custom_call.1} parent=1 // pred_check_branch
      %270 = sbr.rel (0) target = $region37
    $region36: #{tpu_custom_call.1} parent=1 // pred_region
      %271 = dma.done [#allocation4], 256
    $region37: #{tpu_custom_call.1} parent=1 // pred_fallthru
      _
    %272 = vsyncpa [#allocation3], 1
    %273 = vsyncpa [#allocation6], 1
    %274 = vsyncpa [#allocation4], 1

</llo_original>
